<compile_context>
chip_gen: v6e
topology: v6e:2x2x1
jax: 0.10.0
libtpu: 0.0.40
codegen_flags: <defaults>
</compile_context>

<pallas_src>
import functools

import jax
import jax.numpy as jnp
from jax.experimental import pallas as pl
from jax.experimental.pallas import tpu as pltpu

_EPS = 1e-12  # F.normalize default eps


def _isomax_kernel(coeff_ref, f_ref, pn_ref, psq_ref, o_ref, *, drop_fn):
    """coeff_ref: SMEM (1,)        = -|distance_scale| / temperature
       f_ref:     VMEM (TB, C, THW) raw features tile (C sublanes, HW lanes)
       pn_ref:    VMEM (K, C)       L2-normalized prototypes (grid-resident)
       psq_ref:   VMEM (K, 1)       ||pn||^2, hoisted out of the kernel
       o_ref:     VMEM (TB, K, THW) logits tile (lane-dense store)."""
    coeff = coeff_ref[0]
    pn = pn_ref[...].astype(jnp.float32)        # (K, C), already unit-norm
    psq = psq_ref[...].astype(jnp.float32)      # (K, 1)

    tb = f_ref.shape[0]
    for b in range(tb):                         # static unroll over fused batch
        f = f_ref[b].astype(jnp.float32)        # (C, THW)

        # Per-pixel L2 normalization via rsqrt (EUP slot) with F.normalize's
        # eps clamp:  x / max(||x||, eps)  ==  x * min(rsqrt(||x||^2), 1/eps).
        sumsq = jnp.sum(f * f, axis=0, keepdims=True)            # (1, THW)
        inv = jnp.minimum(jax.lax.rsqrt(sumsq), 1.0 / _EPS)

        # cdist(p=2): ||a-b|| = sqrt(max(|a|^2 + |b|^2 - 2 a.b, 0)),
        # laid out as (K, THW) so the store stays lane-dense.
        if drop_fn:
            # C > K: avoid the (C, THW) fn temporary, scale after the matmul.
            dot = jnp.dot(pn, f, preferred_element_type=jnp.float32) * inv
        else:
            dot = jnp.dot(pn, f * inv, preferred_element_type=jnp.float32)
        fsq = sumsq * (inv * inv)                                # ||fn||^2
        d2 = jnp.maximum(fsq + psq - 2.0 * dot, 0.0)             # (K, THW)

        o_ref[b] = (coeff * jnp.sqrt(d2)).astype(o_ref.dtype)


def _round_up(x, m):
    return -(-x // m) * m


def _vmem_limit_bytes():
    """Per-generation scoped-VMEM limit (~75% of physical; 48 MiB on v7x)."""
    cap = 64 << 20  # v7x worst case as fallback
    try:
        info = pltpu.get_tpu_info()
        cap = int(getattr(info, "vmem_capacity_bytes", cap)) or cap
    except Exception:
        pass
    cap = max(cap, 32 << 20)
    return min((cap * 3) // 4, 112 << 20)


def _derive_tiling(B, C, K, HW, tile_budget, drop_fn):
    """Pick (tb, thw, n_hw): batch rows per step, lane tile, #HW tiles."""
    C_pad = _round_up(C, 8)
    K_pad = _round_up(K, 8)

    # Grid-resident prototypes / psq (padded VMEM layout, 2 buffers budgeted).
    resident = 2 * 4 * (K_pad * _round_up(C, 128) + K_pad * 128)
    budget = max(tile_budget - resident, 2 << 20)

    # f32 bytes per lane column per batch row in one step:
    #   features tile (x2 double buffer), output tile (x2),
    #   fn temporary (unless dropped), dot/d2/dist whole-tile temporaries.
    per_col = 4 * ((2 + (0 if drop_fn else 1)) * C_pad + 5 * K_pad)
    cols_cap = max(budget // per_col, 128)

    HW_pad = _round_up(HW, 128)
    thw_cap = max((min(cols_cap, HW_pad) // 128) * 128, 128)
    if HW_pad <= thw_cap:
        thw = HW_pad
    else:
        thw = 0
        t = thw_cap
        while t >= 128:                      # largest lane-dense divisor <= cap
            if HW_pad % t == 0:
                thw = t
                break
            t -= 128
        if thw == 0:                         # no divisor: minimal extra padding
            n = -(-HW_pad // thw_cap)
            thw = _round_up(-(-HW_pad // n), 128)
    n_hw = -(-HW_pad // thw)

    # Fold batch rows per step (amortize per-step overhead / tiny DMAs for
    # small HW) while keeping >= 2 total grid steps when possible (v7x 2 TCs).
    tb_cap = max(min(budget // (per_col * thw), B), 1)
    divisors = [t for t in range(1, B + 1) if B % t == 0 and t <= tb_cap]
    good = [t for t in divisors if (B // t) * n_hw >= 2]
    tb = max(good) if good else max(divisors)
    return tb, thw, n_hw


def isomax_first_part(features, prototypes, distance_scale, temperature=1.0,
                      out_dtype=None):
    """features: (B, C, H, W)  ->  logits: (B, K, H, W)."""
    B, C, H, W = features.shape
    K, Cp = prototypes.shape
    assert C == Cp, "num_features mismatch"
    HW = H * W
    out_dtype = features.dtype if out_dtype is None else out_dtype

    # NCHW-native: just a view, no transpose / extra HBM round-trip.
    x = features.reshape(B, C, HW)

    # Hoisted prototype normalization + squared norms (tiny, done once).
    pn = prototypes.astype(jnp.float32)
    pn = pn / jnp.maximum(jnp.linalg.norm(pn, axis=-1, keepdims=True), _EPS)
    psq = jnp.sum(pn * pn, axis=-1, keepdims=True)               # (K, 1)

    # Fold scale and temperature into a single scalar: logits = coeff * dist.
    coeff = (-jnp.abs(jnp.asarray(distance_scale, jnp.float32).reshape(-1)[:1])
             / jnp.float32(temperature))                          # (1,)

    drop_fn = C > K
    vmem_limit = _vmem_limit_bytes()
    tb, thw, n_hw = _derive_tiling(B, C, K, HW, (vmem_limit * 7) // 8, drop_fn)

    hw_padded = thw * n_hw
    if hw_padded != HW:
        # Keep tiles lane-dense / unmasked; zero columns are harmless
        # (0 * 1e12 stays 0) and are sliced away below.
        x = jnp.pad(x, ((0, 0), (0, 0), (0, hw_padded - HW)))

    grid = (B // tb, n_hw)
    kernel = functools.partial(_isomax_kernel, drop_fn=drop_fn)

    out = pl.pallas_call(
        kernel,
        out_shape=jax.ShapeDtypeStruct((B, K, hw_padded), out_dtype),
        grid_spec=pltpu.PrefetchScalarGridSpec(
            num_scalar_prefetch=0,
            grid=grid,
            in_specs=[
                # folded scalar coefficient -> SMEM
                pl.BlockSpec(memory_space=pltpu.MemorySpace.SMEM),
                # features tile: (tb, C, thw) — C on sublanes, HW on lanes
                pl.BlockSpec((tb, C, thw), lambda b, j: (b, 0, j)),
                # normalized prototypes: full (K, C), resident every step
                pl.BlockSpec((K, C), lambda b, j: (0, 0)),
                # prototype squared norms: full (K, 1), resident every step
                pl.BlockSpec((K, 1), lambda b, j: (0, 0)),
            ],
            # lane-dense output tile: last dim is thw (multiple of 128 / full)
            out_specs=pl.BlockSpec((tb, K, thw), lambda b, j: (b, 0, j)),
        ),
        compiler_params=pltpu.CompilerParams(
            dimension_semantics=("parallel", "parallel"),
            vmem_limit_bytes=vmem_limit),
    )(coeff, x, pn, psq)

    if hw_padded != HW:
        out = out[:, :, :HW]
    # Free reshape: (B, K, H*W) -> (B, K, H, W); no permute needed.
    return out.reshape(B, K, H, W)


def _reference(features, prototypes, distance_scale, temperature=1.0):
    """Pure-JAX reference mirroring the PyTorch forward (direct-diff cdist)."""
    B, C, H, W = features.shape
    K = prototypes.shape[0]
    x = jnp.transpose(features, (0, 2, 3, 1)).reshape(-1, C)
    xn = x / jnp.maximum(jnp.linalg.norm(x, axis=-1, keepdims=True), _EPS)
    pn = prototypes / jnp.maximum(
        jnp.linalg.norm(prototypes, axis=-1, keepdims=True), _EPS)
    diff = xn[:, None, :] - pn[None, :, :]
    dist = jnp.sqrt(jnp.sum(diff * diff, axis=-1))
    logits = -jnp.abs(distance_scale.reshape(-1)[0]) * dist
    logits = jnp.transpose(logits.reshape(B, H, W, K), (0, 3, 1, 2))
    return logits / temperature


if __name__ == "__main__":
    key = jax.random.PRNGKey(0)
    k_feat, k_proto = jax.random.split(key)

    # Small shapes consistent with the module: B x C x H x W features,
    # prototypes (num_classes, num_features), distance_scale scalar.
    B, C, H, W = 2, 4, 16, 16       # num_features = 4
    num_classes = 8
    temperature = 1.0

    features = jax.random.normal(k_feat, (B, C, H, W), dtype=jnp.float32)
    # nn.init.normal_(prototypes, mean=0.0, std=1.0)
    prototypes = jax.random.normal(k_proto, (num_classes, C), dtype=jnp.float32)
    # nn.init.constant_(distance_scale, 1.0)
    distance_scale = jnp.ones((1,), dtype=jnp.float32)

    logits = isomax_first_part(features, prototypes, distance_scale,
                               temperature=temperature)
    jax.block_until_ready(logits)

    ref = _reference(features, prototypes, distance_scale, temperature)
    assert logits.shape == (B, num_classes, H, W)
    assert jnp.allclose(logits, ref, atol=1e-4, rtol=1e-5)

    print("KERNEL_OK")
</pallas_src>

<mosaic_0001>
module attributes {stable_mosaic.version = 11 : i64} {
  func.func @_isomax_kernel(%arg0: i32, %arg1: i32, %arg2: memref<1xf32, #tpu.memory_space<smem>>, %arg3: memref<1x4x256xf32, #tpu.memory_space<vmem>>, %arg4: memref<8x4xf32, #tpu.memory_space<vmem>>, %arg5: memref<8x1xf32, #tpu.memory_space<vmem>>, %arg6: memref<1x8x256xf32, #tpu.memory_space<vmem>>) attributes {dimension_semantics = [#tpu.dimension_semantics<parallel>, #tpu.dimension_semantics<parallel>], iteration_bounds = array<i64: 2, 1>, scalar_prefetch = 0 : i64, scratch_operands = 0 : i64, tpu.core_type = #tpu.core_type<tc>, window_params = [{transform_indices = @transform_0, window_bounds = array<i64: 1>}, {transform_indices = @transform_1, window_bounds = array<i64: 1, 4, 256>}, {pipeline_mode = #tpu.pipeline_mode<synchronous>, transform_indices = @transform_2, window_bounds = array<i64: 8, 4>}, {pipeline_mode = #tpu.pipeline_mode<synchronous>, transform_indices = @transform_3, window_bounds = array<i64: 8, 1>}, {transform_indices = @transform_4, window_bounds = array<i64: 1, 8, 256>}]} {
    %c0 = arith.constant 0 : index
    %0 = memref.load %arg2[%c0] : memref<1xf32, #tpu.memory_space<smem>>
    %c0_0 = arith.constant 0 : index
    %c0_1 = arith.constant 0 : index
    %1 = vector.load %arg4[%c0_0, %c0_1] : memref<8x4xf32, #tpu.memory_space<vmem>>, vector<8x4xf32>
    %c0_2 = arith.constant 0 : index
    %c0_3 = arith.constant 0 : index
    %2 = vector.load %arg5[%c0_2, %c0_3] : memref<8x1xf32, #tpu.memory_space<vmem>>, vector<8x1xf32>
    %c0_4 = arith.constant 0 : index
    %c0_5 = arith.constant 0 : index
    %c0_6 = arith.constant 0 : index
    %3 = vector.load %arg3[%c0_4, %c0_5, %c0_6] : memref<1x4x256xf32, #tpu.memory_space<vmem>>, vector<1x4x256xf32>
    %4 = vector.shape_cast %3 : vector<1x4x256xf32> to vector<4x256xf32>
    %5 = arith.mulf %4, %4 : vector<4x256xf32>
    %cst = arith.constant dense<0.000000e+00> : vector<256xf32>
    %6 = vector.multi_reduction <add>, %5, %cst [0] : vector<4x256xf32> to vector<256xf32>
    %7 = vector.shape_cast %6 : vector<256xf32> to vector<1x256xf32>
    %8 = math.rsqrt %7 : vector<1x256xf32>
    %cst_7 = arith.constant 9.99999995E+11 : f32
    %9 = vector.broadcast %cst_7 : f32 to vector<1x256xf32>
    %10 = arith.minimumf %8, %9 : vector<1x256xf32>
    %11 = vector.broadcast %10 : vector<1x256xf32> to vector<4x256xf32>
    %12 = arith.mulf %4, %11 : vector<4x256xf32>
    %cst_8 = arith.constant dense<0.000000e+00> : vector<8x256xf32>
    %13 = tpu.matmul %1, %12, %cst_8 {dimension_numbers = #tpu.dot_dimension_numbers<[1], [0], [0], [1], [0, 0, 1, 1], [], []>} : vector<8x4xf32>, vector<4x256xf32>, vector<8x256xf32> -> vector<8x256xf32>
    %14 = arith.mulf %10, %10 : vector<1x256xf32>
    %15 = arith.mulf %7, %14 : vector<1x256xf32>
    %16 = vector.broadcast %15 : vector<1x256xf32> to vector<8x256xf32>
    %17 = vector.broadcast %2 : vector<8x1xf32> to vector<8x256xf32>
    %18 = arith.addf %16, %17 : vector<8x256xf32>
    %cst_9 = arith.constant 2.000000e+00 : f32
    %19 = vector.broadcast %cst_9 : f32 to vector<8x256xf32>
    %20 = arith.mulf %19, %13 : vector<8x256xf32>
    %21 = arith.subf %18, %20 : vector<8x256xf32>
    %cst_10 = arith.constant 0.000000e+00 : f32
    %22 = vector.broadcast %cst_10 : f32 to vector<8x256xf32>
    %23 = arith.maximumf %21, %22 : vector<8x256xf32>
    %24 = math.sqrt %23 : vector<8x256xf32>
    %25 = vector.broadcast %0 : f32 to vector<8x256xf32>
    %26 = arith.mulf %25, %24 : vector<8x256xf32>
    %c0_11 = arith.constant 0 : index
    %c0_12 = arith.constant 0 : index
    %c0_13 = arith.constant 0 : index
    %27 = vector.load %arg6[%c0_11, %c0_12, %c0_13] : memref<1x8x256xf32, #tpu.memory_space<vmem>>, vector<1x8x256xf32>
    %28 = vector.shape_cast %27 : vector<1x8x256xf32> to vector<8x256xf32>
    %29 = vector.shape_cast %26 : vector<8x256xf32> to vector<1x8x256xf32>
    tpu.vector_store %arg6[%c0_11, %c0_12, %c0_13], %29 {strides = array<i32>} : memref<1x8x256xf32, #tpu.memory_space<vmem>>, vector<1x8x256xf32>,
    return
  }
  func.func @transform_0(%arg0: i32, %arg1: i32) -> i32 {
    %c0_i32 = arith.constant 0 : i32
    %c0_i32_0 = arith.constant 0 : i32
    return %c0_i32 : i32
  }
  func.func @transform_1(%arg0: i32, %arg1: i32) -> (i32, i32, i32) {
    %c0_i32 = arith.constant 0 : i32
    %c0_i32_0 = arith.constant 0 : i32
    return %arg0, %c0_i32, %arg1 : i32, i32, i32
  }
  func.func @transform_2(%arg0: i32, %arg1: i32) -> (i32, i32) {
    %c0_i32 = arith.constant 0 : i32
    %c0_i32_0 = arith.constant 0 : i32
    %c0_i32_1 = arith.constant 0 : i32
    return %c0_i32, %c0_i32_0 : i32, i32
  }
  func.func @transform_3(%arg0: i32, %arg1: i32) -> (i32, i32) {
    %c0_i32 = arith.constant 0 : i32
    %c0_i32_0 = arith.constant 0 : i32
    %c0_i32_1 = arith.constant 0 : i32
    return %c0_i32, %c0_i32_0 : i32, i32
  }
  func.func @transform_4(%arg0: i32, %arg1: i32) -> (i32, i32, i32) {
    %c0_i32 = arith.constant 0 : i32
    %c0_i32_0 = arith.constant 0 : i32
    return %arg0, %c0_i32, %arg1 : i32, i32, i32
  }
}

</mosaic_0001>

<llo_original>
// kernel: tpu_custom_call.1
$region0: #{tpu_custom_call.1}
  #allocation0 [shape = 'u32[]', space=smem, size = 0x4, offset = 0x4, fixed_abs, tag = 'smem constant byte address 0x4 - core index']
  #allocation1 [shape = 'u32[144,128]{1,0:T(1,128)}', space=vmem, size = 0x12000, scoped, tag = 'internal scratch']
  #allocation2 [shape = 'f32[1]{0:T(128)S(6)}', space=smem, size = 0x200, scoped, tag = 'scoped memory for tpu_custom_call.1']
  %s0 = inlined_call_operand.<no memory space> [shape: f32[1], index: 0, kind: input, shape index: {}]
  %s1 = inlined_call_operand.vmem [shape: f32[2,4,256], index: 1, kind: input, shape index: {}]
  %s2 = inlined_call_operand.vmem [shape: f32[8,4], index: 2, kind: input, shape index: {}]
  %s3 = inlined_call_operand.vmem [shape: f32[8,1], index: 3, kind: input, shape index: {}]
  %s4 = inlined_call_operand.hbm [shape: f32[2,8,256], index: 4, kind: output, shape index: {}]
  %s5 = sld [smem:[#allocation0]]
  $region49: #{tpu_custom_call.1} parent=0
    _
  %s7 = ssub.s32 1, %s5
  %s8 = scalar_select 0, %s7, %s5
  %9 = sst [smem:[#allocation2]] %s0
  $region1: #{tpu_custom_call.1} parent=0
    #allocation3 [shape = 'u8[16384]{0}', space=vmem, size = 0x4000, scoped, tag = 'output window, operand 0']
    #allocation4 [shape = 's32[2]{0}', space=sflag, size = 0x8, scoped, tag = 'scoped memory for tpu_custom_call.1']
    %10 = vsyncpa [#allocation4], 0
    %s11 = scalar_lea.sflag [#allocation4], 1
    %12 = vsyncpa %s11, 0
    loop: start=0, step=1, limit=4
    $region2: #{tpu_custom_call.1} parent=1 // loop_pre_header
      _
    $region3: #{tpu_custom_call.1} parent=1 // loop_header
      %s14 = sphi 0, %s18
      %p15 = scmp.ge.s32.totalorder %s14, 4
      %s21 = sphi 0, %s33
      %s22 = sphi 0, %s29
      %s23 = sphi 0, %s21
      %s24 = sphi 0, %s22
      %s25 = sphi 0, %s23
      %s26 = sphi 0, %s24
      %s34 = sphi 0, %s34
      %s36 = sphi 0, %s34
      %s37 = sphi 0, %s36
      %s51 = sphi 0, %s37
      %s59 = sphi 0, %s61
      %s62 = sphi 0, %s59
      %s63 = sphi 0, %s62
      %s79 = sphi 0, %s63
      %s83 = sphi 0, %s83
      %s85 = sphi 0, %s83
      %s86 = sphi 0, %s85
      %s100 = sphi 0, %s86
      %s104 = sphi 0, %s104
      %s106 = sphi 0, %s104
      %s107 = sphi 0, %s106
      %s121 = sphi 0, %s107
      %s129 = sphi 0, %s131
      %s132 = sphi 0, %s129
      %s133 = sphi 0, %s132
      %s149 = sphi 0, %s133
    $region4: #{tpu_custom_call.1} parent=1 // loop_header_branch
      %17 = sbr.rel (%p15) target = $region8
    $region5: #{tpu_custom_call.1} parent=1 // loop_body
      %s19 = ssub.s32 %s14, 1
      %s20 = ssub.s32 %s14, 2
      %s27 = sadd.s32 1, %s22
      %p28 = scmp.ge.s32.totalorder %s27, 1
      %s29 = scalar_select %p28, 0, %s27
      %s30 = sadd.s32 1, %s21
      %s31 = scalar_select %p28, %s30, %s21
      %p32 = scmp.ge.s32.totalorder %s31, 2
      %s33 = scalar_select %p32, 0, %s31
      %s35 = sadd.s32 %s34, 1
      %p38 = scmp.eq.s32.totalorder %s14, 1
      %p39 = scmp.ne.s32.totalorder %s34, %s36
      %p40 = scmp.eq.s32.totalorder %s14, 0
      %p41 = por %p39, %p40
      %p42 = scmp.ne.s32.totalorder %s34, %s36
      %p43 = scmp.eq.s32.totalorder %s19, 1
      %p44 = por %p42, %p43
      %p45 = scmp.ne.s32.totalorder %s36, %s37
      %p46 = scmp.eq.s32.totalorder %s19, 0
      %p47 = por %p45, %p46
      %p48 = scmp.ne.s32.totalorder %s36, %s37
      %p49 = scmp.eq.s32.totalorder %s20, 1
      %p50 = por %p48, %p49
      %p52 = scmp.ne.s32.totalorder %s37, %s51
      %p53 = scmp.eq.s32.totalorder %s20, 0
      %p54 = por %p52, %p53
      %s55 = ssub.s32 %s21, %s33
      %s56 = ssub.s32 %s22, %s29
      %s57 = sor.u32 %s55, %s56
      %p58 = scmp.eq.s32.totalorder %s57, 0
      %s60 = sadd.s32 %s59, 1
      %s61 = scalar_select %p58, %s59, %s60
      %p64 = pneg %p58
      %p65 = scmp.eq.s32.totalorder %s14, 1
      %p66 = por %p64, %p65
      %p67 = scmp.ne.s32.totalorder %s59, %s62
      %p68 = scmp.eq.s32.totalorder %s14, 0
      %p69 = por %p67, %p68
      %p70 = scmp.ne.s32.totalorder %s59, %s62
      %p71 = scmp.eq.s32.totalorder %s19, 1
      %p72 = por %p70, %p71
      %p73 = scmp.ne.s32.totalorder %s62, %s63
      %p74 = scmp.eq.s32.totalorder %s19, 0
      %p75 = por %p73, %p74
      %p76 = scmp.ne.s32.totalorder %s62, %s63
      %p77 = scmp.eq.s32.totalorder %s20, 1
      %p78 = por %p76, %p77
      %p80 = scmp.ne.s32.totalorder %s63, %s79
      %p81 = scmp.eq.s32.totalorder %s20, 0
      %p82 = por %p80, %p81
      %s84 = sadd.s32 %s83, 1
      %p87 = scmp.eq.s32.totalorder %s14, 1
      %p88 = scmp.ne.s32.totalorder %s83, %s85
      %p89 = scmp.eq.s32.totalorder %s14, 0
      %p90 = por %p88, %p89
      %p91 = scmp.ne.s32.totalorder %s83, %s85
      %p92 = scmp.eq.s32.totalorder %s19, 1
      %p93 = por %p91, %p92
      %p94 = scmp.ne.s32.totalorder %s85, %s86
      %p95 = scmp.eq.s32.totalorder %s19, 0
      %p96 = por %p94, %p95
      %p97 = scmp.ne.s32.totalorder %s85, %s86
      %p98 = scmp.eq.s32.totalorder %s20, 1
      %p99 = por %p97, %p98
      %p101 = scmp.ne.s32.totalorder %s86, %s100
      %p102 = scmp.eq.s32.totalorder %s20, 0
      %p103 = por %p101, %p102
      %s105 = sadd.s32 %s104, 1
      %p108 = scmp.eq.s32.totalorder %s14, 1
      %p109 = scmp.ne.s32.totalorder %s104, %s106
      %p110 = scmp.eq.s32.totalorder %s14, 0
      %p111 = por %p109, %p110
      %p112 = scmp.ne.s32.totalorder %s104, %s106
      %p113 = scmp.eq.s32.totalorder %s19, 1
      %p114 = por %p112, %p113
      %p115 = scmp.ne.s32.totalorder %s106, %s107
      %p116 = scmp.eq.s32.totalorder %s19, 0
      %p117 = por %p115, %p116
      %p118 = scmp.ne.s32.totalorder %s106, %s107
      %p119 = scmp.eq.s32.totalorder %s20, 1
      %p120 = por %p118, %p119
      %p122 = scmp.ne.s32.totalorder %s107, %s121
      %p123 = scmp.eq.s32.totalorder %s20, 0
      %p124 = por %p122, %p123
      %s125 = ssub.s32 %s21, %s33
      %s126 = ssub.s32 %s22, %s29
      %s127 = sor.u32 %s125, %s126
      %p128 = scmp.eq.s32.totalorder %s127, 0
      %s130 = sadd.s32 %s129, 1
      %s131 = scalar_select %p128, %s129, %s130
      %p134 = pneg %p128
      %p135 = scmp.eq.s32.totalorder %s14, 1
      %p136 = por %p134, %p135
      %p137 = scmp.ne.s32.totalorder %s129, %s132
      %p138 = scmp.eq.s32.totalorder %s14, 0
      %p139 = por %p137, %p138
      %p140 = scmp.ne.s32.totalorder %s129, %s132
      %p141 = scmp.eq.s32.totalorder %s19, 1
      %p142 = por %p140, %p141
      %p143 = scmp.ne.s32.totalorder %s132, %s133
      %p144 = scmp.eq.s32.totalorder %s19, 0
      %p145 = por %p143, %p144
      %p146 = scmp.ne.s32.totalorder %s132, %s133
      %p147 = scmp.eq.s32.totalorder %s20, 1
      %p148 = por %p146, %p147
      %p150 = scmp.ne.s32.totalorder %s133, %s149
      %p151 = scmp.eq.s32.totalorder %s20, 0
      %p152 = por %p150, %p151
      %p153 = scmp.le.s32.totalorder 1, %s14
      %p154 = scmp.lt.s32.totalorder %s14, 3
      %p155 = pnand %p153, %p154
      %p156 = pneg %p155
      // Predicated region
      $region9: #{tpu_custom_call.1} parent=5 // pred_check
        _
      $region10: #{tpu_custom_call.1} parent=5 // pred_check_branch
        %158 = sbr.rel (%p155) target = $region12
      $region11: #{tpu_custom_call.1} parent=5 // pred_region
        %s159 = ssub.s32 %s14, 1
        // Predicated region
        $region13: #{tpu_custom_call.1} parent=11 // pred_check
          %p160 = pneg %p47
        $region14: #{tpu_custom_call.1} parent=11 // pred_check_branch
          %162 = sbr.rel (%p160) target = $region16
        $region15: #{tpu_custom_call.1} parent=11 // pred_region
          _
        $region16: #{tpu_custom_call.1} parent=11 // pred_fallthru
          _
        // Predicated region
        $region17: #{tpu_custom_call.1} parent=11 // pred_check
          %p163 = pneg %p96
        $region18: #{tpu_custom_call.1} parent=11 // pred_check_branch
          %165 = sbr.rel (%p163) target = $region20
        $region19: #{tpu_custom_call.1} parent=11 // pred_region
          _
        $region20: #{tpu_custom_call.1} parent=11 // pred_fallthru
          _
        // Predicated region
        $region21: #{tpu_custom_call.1} parent=11 // pred_check
          %p166 = pneg %p117
        $region22: #{tpu_custom_call.1} parent=11 // pred_check_branch
          %168 = sbr.rel (%p166) target = $region24
        $region23: #{tpu_custom_call.1} parent=11 // pred_region
          _
        $region24: #{tpu_custom_call.1} parent=11 // pred_fallthru
          _
      $region12: #{tpu_custom_call.1} parent=5 // pred_fallthru
        _
      %p169 = scmp.lt.s32.totalorder %s14, 2
      // Predicated region
      $region25: #{tpu_custom_call.1} parent=5 // pred_check
        %p170 = pneg %p169
      $region26: #{tpu_custom_call.1} parent=5 // pred_check_branch
        %172 = sbr.rel (%p170) target = $region28
      $region27: #{tpu_custom_call.1} parent=5 // pred_region
        // Predicated region
        $region29: #{tpu_custom_call.1} parent=27 // pred_check
          %p173 = pneg %p69
        $region30: #{tpu_custom_call.1} parent=27 // pred_check_branch
          %175 = sbr.rel (%p173) target = $region32
        $region31: #{tpu_custom_call.1} parent=27 // pred_region
          %s176 = smul.u32 2, %s22
          %p177 = scmp.lt.s32.totalorder %s21, 1
          %s178 = scalar_select %p177, %s21, 1
          %p179 = scmp.lt.s32.totalorder %s176, 1
          %s180 = scalar_select %p179, %s176, 1
          %s181 = smul.addr %s178, 2
          %s182 = sadd.s32 %s180, %s181
          %s183 = smul.addr %s182, 4
          %s184 = scalar_lea.vmem %s1, %s183
          %s185 = smul.u32 2, %s22
        $region32: #{tpu_custom_call.1} parent=27 // pred_fallthru
          _
      $region28: #{tpu_custom_call.1} parent=5 // pred_fallthru
        _
      %p186 = scmp.le.s32.totalorder 1, %s14
      %p187 = scmp.lt.s32.totalorder %s14, 3
      %p188 = pnand %p186, %p187
      %p189 = pneg %p188
      // Predicated region
      $region33: #{tpu_custom_call.1} parent=5 // pred_check
        _
      $region34: #{tpu_custom_call.1} parent=5 // pred_check_branch
        %191 = sbr.rel (%p188) target = $region36
      $region35: #{tpu_custom_call.1} parent=5 // pred_region
        %s192 = ssub.s32 %s14, 1
        %p193 = pneg %p47
        %p194 = pneg %p44
        %s195 = smul.u32 2, %s24
        %p196 = scmp.lt.s32.totalorder %s23, 1
        %s197 = scalar_select %p196, %s23, 1
        %p198 = scmp.lt.s32.totalorder %s195, 1
        %s199 = scalar_select %p198, %s195, 1
        %s200 = smul.addr %s197, 2
        %s201 = sadd.s32 %s199, %s200
        %s202 = smul.addr %s201, 4
        %s203 = scalar_lea.vmem %s1, %s202
        %p204 = pneg %p75
        %p205 = pneg %p72
        %p206 = pneg %p96
        %p207 = pneg %p93
        %p208 = pneg %p117
        %p209 = pneg %p114
        %p210 = pneg %p145
        %p211 = pneg %p142
        %s212 = sand.u32 %s132, 1
        %s213 = scalar_lea.sflag [#allocation4], %s212
        %s214 = sand.u32 %s132, 1
        %s215 = smul.addr %s214, 16
        %s216 = scalar_lea.vmem [#allocation3], %s215
        %s217 = smul.u32 2, %s24
        %p218 = scmp.lt.s32.totalorder %s23, 1
        %s219 = scalar_select %p218, %s23, 1
        %p220 = scmp.lt.s32.totalorder %s217, 1
        %s221 = scalar_select %p220, %s217, 1
        %s222 = smul.addr %s219, 2
        %s223 = sadd.s32 %s221, %s222
        %s224 = smul.addr %s223, 4
        %s225 = scalar_lea.vmem %s1, %s224
        %s226 = smul.u32 2, %s24
        %s227 = smul.u32 2, %s24
        %s228 = sld [smem:[#allocation2]]
        %v229 = vld [vmem:[%s2] sm:$0xff]
        %v230 = vld [vmem:[%s3] sm:$0xff]
        %v231 = vld [vmem:[%s225] sm:$0xff]
        %v232 = vmul.f32 %v231, %v231
        %v234 = vcombine.high %v232, %v232
        %vm236 = vcmask 1043456
        %v237 = vsel %vm236, %v232, 0.0
        %v238 = vrot.slane %v237, 4
        %v239 = vadd.f32 %v237, %v238
        %v240 = vrot.slane %v239, 2
        %v241 = vadd.f32 %v239, %v240
        %v242 = vrot.slane %v241, 1
        %v243 = vadd.f32 %v241, %v242
        %v244 = vsel %vm236, %v234, 0.0
        %v245 = vrot.slane %v244, 4
        %v246 = vadd.f32 %v244, %v245
        %v247 = vrot.slane %v246, 2
        %v248 = vadd.f32 %v246, %v247
        %v249 = vrot.slane %v248, 1
        %v250 = vadd.f32 %v248, %v249
        %v251 = vrsqrt.pop %v243
        %v252 = vrsqrt.pop %v250
        %v253 = vmin.f32 %v251, 1e+12
        %v254 = vmin.f32 %v252, 1e+12
        %v257 = vcombine.low %v253, %v254
        %v259 = vmul.f32 %v231, %v257
        %v261 = vcombine.high %v259, %v259
        %vm262 = vcmask 31744
        %v264 = vsel %vm262, %v229, 0
        %v266 = vsel %vm236, %v259, 0
        %v268 = vsel %vm236, %v261, 0
        %270 = vmatprep.subr.mxu0 0.0
        %271 = vmatpush1.msra.mxu0 0.0
        %272 = vmatprep.subr.mxu0 0.0
        %273 = vmatpush1.msra.mxu0 0.0
        %274 = vmatprep.subr.mxu0 0.0
        %275 = vmatpush1.msra.mxu0 0.0
        %276 = vmatprep.subr.mxu0 0.0
        %277 = vmatpush1.msra.mxu0 0.0
        %278 = vmatprep.subr.mxu0 0.0
        %279 = vmatpush1.msra.mxu0 0.0
        %280 = vmatprep.subr.mxu0 0.0
        %281 = vmatpush1.msra.mxu0 0.0
        %282 = vmatprep.subr.mxu0 0.0
        %283 = vmatpush1.msra.mxu0 0.0
        %284 = vmatprep.subr.mxu0 0.0
        %285 = vmatpush1.msra.mxu0 0.0
        %286 = vmatprep.subr.mxu0 0.0
        %287 = vmatpush1.msra.mxu0 0.0
        %288 = vmatprep.subr.mxu0 0.0
        %289 = vmatpush1.msra.mxu0 0.0
        %290 = vmatprep.subr.mxu0 0.0
        %291 = vmatpush1.msra.mxu0 0.0
        %292 = vmatprep.subr.mxu0 0.0
        %293 = vmatpush1.msra.mxu0 0.0
        %294 = vmatprep.subr.mxu0 0.0
        %295 = vmatpush1.msra.mxu0 0.0
        %296 = vmatprep.subr.mxu0 0.0
        %297 = vmatpush1.msra.mxu0 0.0
        %298 = vmatprep.subr.mxu0 0.0
        %299 = vmatpush1.msra.mxu0 0.0
        %300 = vmatprep.subr.mxu0 %v268
        %301 = vmatpush1.msra.mxu0 %v266
        %302 = vmatprep.subr.mxu0 0.0
        %303 = vmatpush2.msra.mxu0 0.0
        %304 = vmatprep.subr.mxu0 0.0
        %305 = vmatpush2.msra.mxu0 0.0
        %306 = vmatprep.subr.mxu0 0.0
        %307 = vmatpush2.msra.mxu0 0.0
        %308 = vmatprep.subr.mxu0 0.0
        %309 = vmatpush2.msra.mxu0 0.0
        %310 = vmatprep.subr.mxu0 0.0
        %311 = vmatpush2.msra.mxu0 0.0
        %312 = vmatprep.subr.mxu0 0.0
        %313 = vmatpush2.msra.mxu0 0.0
        %314 = vmatprep.subr.mxu0 0.0
        %315 = vmatpush2.msra.mxu0 0.0
        %316 = vmatprep.subr.mxu0 0.0
        %317 = vmatpush2.msra.mxu0 0.0
        %318 = vmatprep.subr.mxu0 0.0
        %319 = vmatpush2.msra.mxu0 0.0
        %320 = vmatprep.subr.mxu0 0.0
        %321 = vmatpush2.msra.mxu0 0.0
        %322 = vmatprep.subr.mxu0 0.0
        %323 = vmatpush2.msra.mxu0 0.0
        %324 = vmatprep.subr.mxu0 0.0
        %325 = vmatpush2.msra.mxu0 0.0
        %326 = vmatprep.subr.mxu0 0.0
        %327 = vmatpush2.msra.mxu0 0.0
        %328 = vmatprep.subr.mxu0 0.0
        %329 = vmatpush2.msra.mxu0 0.0
        %330 = vmatprep.subr.mxu0 0.0
        %331 = vmatpush2.msra.mxu0 0.0
        %332 = vmatprep.subr.mxu0 0.0
        %333 = vmatpush2.msra.mxu0 0.0
        %334 = vmatprep.mubr.f32.mxu0 0.0
        %335 = vmatmul.mubr.f32.gmra.mxu0 %v264
        %v336 = vpop.f32.mrf.mxu0
        %v337 = vadd.f32 0.0, %v336
        %v338 = vpop.f32.mrf.mxu0
        %v339 = vadd.f32 0.0, %v338
        %340 = vdwg.mxu0
        %v341 = vmul.f32 %v253, %v253
        %v342 = vmul.f32 %v254, %v254
        %v343 = vmul.f32 %v243, %v341
        %v344 = vmul.f32 %v250, %v342
        %346 = vset.pattern.permute.xlu0 0
        %347 = vperm.xlu0 %346, %v230
        %v348 = vpop.permute.xlu0 %347
        %v350 = vadd.f32 %v343, %v348
        %v351 = vadd.f32 %v344, %v348
        %v352 = vmul.f32 %v337, 2.0
        %v353 = vmul.f32 %v339, 2.0
        %v354 = vsub.f32 %v350, %v352
        %v355 = vsub.f32 %v351, %v353
        %v356 = vmax.f32 %v354, 0.0
        %v357 = vmax.f32 %v355, 0.0
        %v358 = vrsqrt.pop %v356
        %v359 = vmul.f32 %v356, %v358
        %vm360 = vcmp.eq.f32.partialorder %v356, inf
        %v361 = vsel %vm360, %v356, %v359
        %vm362 = vcmp.eq.f32.partialorder %v356, 0.0
        %v363 = vand.u32 %v356, 2147483648
        %v364 = vsel %vm362, %v363, %v361
        %v365 = vrsqrt.pop %v357
        %v366 = vmul.f32 %v357, %v365
        %vm367 = vcmp.eq.f32.partialorder %v357, inf
        %v368 = vsel %vm367, %v357, %v366
        %vm369 = vcmp.eq.f32.partialorder %v357, 0.0
        %v370 = vand.u32 %v357, 2147483648
        %v371 = vsel %vm369, %v370, %v368
        %v372 = vstv %s228
        %v373 = vmul.f32 %v372, %v364
        %v374 = vmul.f32 %v372, %v371
        %375 = vst [vmem:[%s216] sm:$0xff] %v373
        %376 = vst [vmem:[%s216 + $0x8] sm:$0xff] %v374
        %s377 = sand.u32 %s132, 1
        %s378 = scalar_lea.sflag [#allocation4], %s377
        %s379 = sand.u32 %s132, 1
        %s380 = smul.addr %s379, 16
        %s381 = scalar_lea.vmem [#allocation3], %s380
        // Predicated region
        $region37: #{tpu_custom_call.1} parent=35 // pred_check
          %p382 = pneg %p142
        $region38: #{tpu_custom_call.1} parent=35 // pred_check_branch
          %384 = sbr.rel (%p382) target = $region40
        $region39: #{tpu_custom_call.1} parent=35 // pred_region
          %s385 = smul.u32 2, %s24
          %s387 = ssub.s32 256, 256
          %388 = vsyncadd %s378, %s387
          %s389 = smul.addr %s23, 2
          %s390 = sadd.s32 %s385, %s389
          %s391 = smul.addr %s390, 128
          %s392 = scalar_lea.hbm %s4, %s391
          %s394 = sshll.u32 %s381, 4
          %s395 = int_to_ptr.vmem [resolvable:$true] %s394
          %397 = dma.vmem_to_hbm [thread:$0]  %s395, 256, %s392, %s378
        $region40: #{tpu_custom_call.1} parent=35 // pred_fallthru
          _
      $region36: #{tpu_custom_call.1} parent=5 // pred_fallthru
        _
      %p398 = scmp.le.s32.totalorder 2, %s14
      // Predicated region
      $region41: #{tpu_custom_call.1} parent=5 // pred_check
        %p399 = pneg %p398
      $region42: #{tpu_custom_call.1} parent=5 // pred_check_branch
        %401 = sbr.rel (%p399) target = $region44
      $region43: #{tpu_custom_call.1} parent=5 // pred_region
        %s402 = ssub.s32 %s14, 2
        // Predicated region
        $region45: #{tpu_custom_call.1} parent=43 // pred_check
          %p403 = pneg %p148
        $region46: #{tpu_custom_call.1} parent=43 // pred_check_branch
          %405 = sbr.rel (%p403) target = $region48
        $region47: #{tpu_custom_call.1} parent=43 // pred_region
          %s406 = sand.u32 %s133, 1
          %s407 = scalar_lea.sflag [#allocation4], %s406
          %s408 = sand.u32 %s133, 1
          %s409 = smul.addr %s408, 16
          %s410 = scalar_lea.vmem [#allocation3], %s409
          %411 = dma.done %s407, 256
        $region48: #{tpu_custom_call.1} parent=43 // pred_fallthru
          _
      $region44: #{tpu_custom_call.1} parent=5 // pred_fallthru
        _
    $region6: #{tpu_custom_call.1} parent=1 // loop_footer
      %s18 = sadd.s32 1, %s14
    $region7: #{tpu_custom_call.1} parent=1 // loop_footer_branch
      %13 = sbr.rel target = $region3
    $region8: #{tpu_custom_call.1} parent=1 // loop_exit
      _
    %412 = vsyncpa [#allocation4], 1
    %s413 = scalar_lea.sflag [#allocation4], 1
    %414 = vsyncpa %s413, 1

</llo_original>
